<compile_context>
chip_gen: v7x
topology: tpu7x:2x2x1
jax: 0.10.0
libtpu: 0.0.40
codegen_flags: <defaults>
</compile_context>

<pallas_src>
import jax
import jax.numpy as jnp
import numpy as np
from jax.experimental import pallas as pl
from jax.experimental.pallas import tpu as pltpu

# ----------------------------- configuration -----------------------------
DATA_DIM = 16
HIDDEN_DIM = 32
LATENT_DIM = 16
SEQ_LEN = 8          # unused in forward (kept for parity with the module ctor)
DEPTH = 2
BATCH = 8
DTYPE = jnp.float32


# ------------------------------ Pallas kernel -----------------------------
def recurrent_decoder_kernel(
    z_ref,
    wa_ref, wb_ref, wc_ref, wd_ref,
    ba_ref, bb_ref, bc_ref, bd_ref,
    out_ref,
):
    H = HIDDEN_DIM
    z = z_ref[...]

    # Stage A: z @ [l2h_W | W_ih0(r|z|n)] -> [B, 4H]  (exactly one 128-lane tile)
    #   bias slab ba = [l2h_b | b_ir0+b_hr0 | b_iz0+b_hz0 | b_in0]
    a = jnp.dot(z, wa_ref[...], preferred_element_type=jnp.float32) + ba_ref[...]
    h_state = a[:, :H]          # latent2hidden output (bias included)
    gi0 = a[:, H:]              # layer-0 input-side gates (r/z biases pre-summed)

    # Stage B: h_state @ [W_hh0(r|z|n) | W_hh1(r|z|n)] -> [B, 6H]
    #   bias slab bb = [0 | 0 | b_hn0 | b_ir1+b_hr1 | b_iz1+b_hz1 | b_hn1]
    b = jnp.dot(h_state, wb_ref[...], preferred_element_type=jnp.float32) + bb_ref[...]
    gh0 = b[:, :3 * H]          # layer-0 hidden-side gates (n slot carries b_hn0)
    gh1 = b[:, 3 * H:]          # layer-1 hidden-side gates (r/z biases pre-summed)

    # GRU layer 0 (input = z, hidden = h_state); single sigmoid over r|z slice.
    rz0 = jax.nn.sigmoid(gi0[:, :2 * H] + gh0[:, :2 * H])
    r0, u0 = rz0[:, :H], rz0[:, H:]
    n0 = jnp.tanh(gi0[:, 2 * H:] + r0 * gh0[:, 2 * H:])
    h0 = (1.0 - u0) * n0 + u0 * h_state

    # Stage C: h0 @ [W_ih1(r|z|n)] -> [B, 3H]; bias slab bc = [0 | 0 | b_in1]
    gi1 = jnp.dot(h0, wc_ref[...], preferred_element_type=jnp.float32) + bc_ref[...]

    # GRU layer 1 (input = h0, hidden = h_state)
    rz1 = jax.nn.sigmoid(gi1[:, :2 * H] + gh1[:, :2 * H])
    r1, u1 = rz1[:, :H], rz1[:, H:]
    n1 = jnp.tanh(gi1[:, 2 * H:] + r1 * gh1[:, 2 * H:])
    h1 = (1.0 - u1) * n1 + u1 * h_state

    # Stage D: hidden2output
    out_ref[...] = (
        jnp.dot(h1, wd_ref[...], preferred_element_type=jnp.float32) + bd_ref[...]
    ).astype(out_ref.dtype)


# ------------------------- one-time parameter packing ----------------------
def pack_params(params):
    """Pack PyTorch-layout params into a handful of lane-dense slabs. Call ONCE."""
    H = HIDDEN_DIM

    def split3(m):  # [3H, in] (gate order r, z, n) -> three [in, H] blocks
        return m[:H].T, m[H:2 * H].T, m[2 * H:].T

    w_ir0, w_iz0, w_in0 = split3(params["w_ih_l0"])
    w_hr0, w_hz0, w_hn0 = split3(params["w_hh_l0"])
    w_ir1, w_iz1, w_in1 = split3(params["w_ih_l1"])
    w_hr1, w_hz1, w_hn1 = split3(params["w_hh_l1"])

    b_ih0, b_hh0 = params["b_ih_l0"], params["b_hh_l0"]
    b_ih1, b_hh1 = params["b_ih_l1"], params["b_hh_l1"]
    zeros_h = jnp.zeros((H,), DTYPE)

    wa = jnp.concatenate([params["l2h_w"].T, w_ir0, w_iz0, w_in0], axis=1)    # [L, 4H]
    wb = jnp.concatenate([w_hr0, w_hz0, w_hn0, w_hr1, w_hz1, w_hn1], axis=1)  # [H, 6H]
    wc = jnp.concatenate([w_ir1, w_iz1, w_in1], axis=1)                       # [H, 3H]
    wd = params["h2o_w"].T                                                    # [H, D]

    ba = jnp.concatenate([params["l2h_b"],
                          b_ih0[:H] + b_hh0[:H],
                          b_ih0[H:2 * H] + b_hh0[H:2 * H],
                          b_ih0[2 * H:]])[None, :]                            # [1, 4H]
    bb = jnp.concatenate([zeros_h, zeros_h, b_hh0[2 * H:],
                          b_ih1[:H] + b_hh1[:H],
                          b_ih1[H:2 * H] + b_hh1[H:2 * H],
                          b_hh1[2 * H:]])[None, :]                            # [1, 6H]
    bc = jnp.concatenate([zeros_h, zeros_h, b_ih1[2 * H:]])[None, :]          # [1, 3H]
    bd = params["h2o_b"][None, :]                                             # [1, D]

    return {"wa": wa, "wb": wb, "wc": wc, "wd": wd,
            "ba": ba, "bb": bb, "bc": bc, "bd": bd}


# ----------------------------- wrapper (glue) ------------------------------
def recurrent_decoder_forward(z, packed):
    """z: [B, LATENT_DIM], packed: output of pack_params -> x: [B, DATA_DIM]."""
    B = z.shape[0]
    args = (z,
            packed["wa"], packed["wb"], packed["wc"], packed["wd"],
            packed["ba"], packed["bb"], packed["bc"], packed["bd"])

    flops = 2 * B * (LATENT_DIM * 4 * HIDDEN_DIM
                     + HIDDEN_DIM * 6 * HIDDEN_DIM
                     + HIDDEN_DIM * 3 * HIDDEN_DIM
                     + HIDDEN_DIM * DATA_DIM)
    transcendentals = B * 6 * HIDDEN_DIM  # 2 layers x (2H sigmoid + H tanh)
    bytes_accessed = sum(int(np.prod(a.shape)) * 4 for a in args) + B * DATA_DIM * 4

    return pl.pallas_call(
        recurrent_decoder_kernel,
        out_shape=jax.ShapeDtypeStruct((B, DATA_DIM), DTYPE),
        in_specs=[pl.BlockSpec(memory_space=pltpu.MemorySpace.VMEM)] * len(args),
        out_specs=pl.BlockSpec(memory_space=pltpu.MemorySpace.VMEM),
        cost_estimate=pl.CostEstimate(flops=flops,
                                      transcendentals=transcendentals,
                                      bytes_accessed=bytes_accessed),
    )(*args)


# --------------------------- pure-JAX reference ----------------------------
def reference_forward(z, params):
    def linear(x, w, b):
        return x @ w.T + b

    def gru_cell(x, h, w_ih, w_hh, b_ih, b_hh):
        H = w_hh.shape[1]
        gi = x @ w_ih.T + b_ih
        gh = h @ w_hh.T + b_hh
        i_r, i_z, i_n = gi[:, :H], gi[:, H:2 * H], gi[:, 2 * H:]
        h_r, h_z, h_n = gh[:, :H], gh[:, H:2 * H], gh[:, 2 * H:]
        r = jax.nn.sigmoid(i_r + h_r)
        u = jax.nn.sigmoid(i_z + h_z)
        n = jnp.tanh(i_n + r * h_n)
        return (1.0 - u) * n + u * h

    h_state = linear(z, params["l2h_w"], params["l2h_b"])
    h0 = gru_cell(z, h_state, params["w_ih_l0"], params["w_hh_l0"],
                  params["b_ih_l0"], params["b_hh_l0"])
    h1 = gru_cell(h0, h_state, params["w_ih_l1"], params["w_hh_l1"],
                  params["b_ih_l1"], params["b_hh_l1"])
    return linear(h1, params["h2o_w"], params["h2o_b"])


# ------------------------- deterministic parameters ------------------------
def make_params(key):
    ks = jax.random.split(key, 12)
    H, L, D = HIDDEN_DIM, LATENT_DIM, DATA_DIM

    def xavier(k, shape):
        bound = float(np.sqrt(6.0 / (shape[0] + shape[1])))
        return jax.random.uniform(k, shape, DTYPE, -bound, bound)

    def unif(k, shape, fan):
        bound = float(1.0 / np.sqrt(fan))
        return jax.random.uniform(k, shape, DTYPE, -bound, bound)

    return {
        # latent2hidden (xavier_uniform weight, default-uniform bias)
        "l2h_w": xavier(ks[0], (H, L)),
        "l2h_b": unif(ks[1], (H,), L),
        # hidden2output
        "h2o_w": xavier(ks[2], (D, H)),
        "h2o_b": unif(ks[3], (D,), H),
        # GRU layer 0
        "w_ih_l0": unif(ks[4], (3 * H, L), H),
        "w_hh_l0": unif(ks[5], (3 * H, H), H),
        "b_ih_l0": unif(ks[6], (3 * H,), H),
        "b_hh_l0": unif(ks[7], (3 * H,), H),
        # GRU layer 1
        "w_ih_l1": unif(ks[8], (3 * H, H), H),
        "w_hh_l1": unif(ks[9], (3 * H, H), H),
        "b_ih_l1": unif(ks[10], (3 * H,), H),
        "b_hh_l1": unif(ks[11], (3 * H,), H),
    }


if __name__ == "__main__":
    key = jax.random.PRNGKey(0)
    k_param, k_z = jax.random.split(key)
    params = make_params(k_param)
    z = jax.random.normal(k_z, (BATCH, LATENT_DIM), DTYPE)

    packed = jax.tree_util.tree_map(jax.block_until_ready, pack_params(params))

    out = recurrent_decoder_forward(z, packed)
    out = jax.block_until_ready(out)

    ref = jax.block_until_ready(reference_forward(z, params))
    np.testing.assert_allclose(np.asarray(out), np.asarray(ref),
                               rtol=1e-5, atol=1e-5)
    assert out.shape == (BATCH, DATA_DIM)
    print("KERNEL_OK")
</pallas_src>

<mosaic_0001>
module attributes {stable_mosaic.version = 11 : i64} {
  func.func @recurrent_decoder_kernel(%arg0: memref<8x16xf32, #tpu.memory_space<vmem>>, %arg1: memref<16x128xf32, #tpu.memory_space<vmem>>, %arg2: memref<32x192xf32, #tpu.memory_space<vmem>>, %arg3: memref<32x96xf32, #tpu.memory_space<vmem>>, %arg4: memref<32x16xf32, #tpu.memory_space<vmem>>, %arg5: memref<1x128xf32, #tpu.memory_space<vmem>>, %arg6: memref<1x192xf32, #tpu.memory_space<vmem>>, %arg7: memref<1x96xf32, #tpu.memory_space<vmem>>, %arg8: memref<1x16xf32, #tpu.memory_space<vmem>>, %arg9: memref<8x16xf32, #tpu.memory_space<vmem>>) attributes {dimension_semantics = [], scalar_prefetch = 0 : i64, scratch_operands = 0 : i64, tpu.core_type = #tpu.core_type<tc>} {
    %c0 = arith.constant 0 : index
    %c0_0 = arith.constant 0 : index
    %0 = vector.load %arg0[%c0, %c0_0] : memref<8x16xf32, #tpu.memory_space<vmem>>, vector<8x16xf32>
    %c0_1 = arith.constant 0 : index
    %c0_2 = arith.constant 0 : index
    %1 = vector.load %arg1[%c0_1, %c0_2] : memref<16x128xf32, #tpu.memory_space<vmem>>, vector<16x128xf32>
    %cst = arith.constant dense<0.000000e+00> : vector<8x128xf32>
    %2 = tpu.matmul %0, %1, %cst {dimension_numbers = #tpu.dot_dimension_numbers<[1], [0], [0], [1], [0, 0, 1, 1], [], []>} : vector<8x16xf32>, vector<16x128xf32>, vector<8x128xf32> -> vector<8x128xf32>
    %c0_3 = arith.constant 0 : index
    %c0_4 = arith.constant 0 : index
    %3 = vector.load %arg5[%c0_3, %c0_4] : memref<1x128xf32, #tpu.memory_space<vmem>>, vector<1x128xf32>
    %4 = vector.broadcast %3 : vector<1x128xf32> to vector<8x128xf32>
    %5 = arith.addf %2, %4 : vector<8x128xf32>
    %6 = vector.extract_strided_slice %5 {offsets = [0, 0], sizes = [8, 32], strides = [1, 1]} : vector<8x128xf32> to vector<8x32xf32>
    %7 = vector.extract_strided_slice %5 {offsets = [0, 32], sizes = [8, 96], strides = [1, 1]} : vector<8x128xf32> to vector<8x96xf32>
    %c0_5 = arith.constant 0 : index
    %c0_6 = arith.constant 0 : index
    %8 = vector.load %arg2[%c0_5, %c0_6] : memref<32x192xf32, #tpu.memory_space<vmem>>, vector<32x192xf32>
    %cst_7 = arith.constant dense<0.000000e+00> : vector<8x192xf32>
    %9 = tpu.matmul %6, %8, %cst_7 {dimension_numbers = #tpu.dot_dimension_numbers<[1], [0], [0], [1], [0, 0, 1, 1], [], []>} : vector<8x32xf32>, vector<32x192xf32>, vector<8x192xf32> -> vector<8x192xf32>
    %c0_8 = arith.constant 0 : index
    %c0_9 = arith.constant 0 : index
    %10 = vector.load %arg6[%c0_8, %c0_9] : memref<1x192xf32, #tpu.memory_space<vmem>>, vector<1x192xf32>
    %11 = vector.broadcast %10 : vector<1x192xf32> to vector<8x192xf32>
    %12 = arith.addf %9, %11 : vector<8x192xf32>
    %13 = vector.extract_strided_slice %12 {offsets = [0, 0], sizes = [8, 96], strides = [1, 1]} : vector<8x192xf32> to vector<8x96xf32>
    %14 = vector.extract_strided_slice %12 {offsets = [0, 96], sizes = [8, 96], strides = [1, 1]} : vector<8x192xf32> to vector<8x96xf32>
    %15 = vector.extract_strided_slice %7 {offsets = [0, 0], sizes = [8, 64], strides = [1, 1]} : vector<8x96xf32> to vector<8x64xf32>
    %16 = vector.extract_strided_slice %13 {offsets = [0, 0], sizes = [8, 64], strides = [1, 1]} : vector<8x96xf32> to vector<8x64xf32>
    %17 = arith.addf %15, %16 : vector<8x64xf32>
    %18 = arith.negf %17 : vector<8x64xf32>
    %19 = math.exp %18 : vector<8x64xf32>
    %cst_10 = arith.constant 1.000000e+00 : f32
    %20 = vector.broadcast %cst_10 : f32 to vector<8x64xf32>
    %21 = arith.addf %20, %19 : vector<8x64xf32>
    %22 = arith.divf %20, %21 : vector<8x64xf32>
    %23 = vector.extract_strided_slice %22 {offsets = [0, 0], sizes = [8, 32], strides = [1, 1]} : vector<8x64xf32> to vector<8x32xf32>
    %24 = vector.extract_strided_slice %22 {offsets = [0, 32], sizes = [8, 32], strides = [1, 1]} : vector<8x64xf32> to vector<8x32xf32>
    %25 = vector.extract_strided_slice %7 {offsets = [0, 64], sizes = [8, 32], strides = [1, 1]} : vector<8x96xf32> to vector<8x32xf32>
    %26 = vector.extract_strided_slice %13 {offsets = [0, 64], sizes = [8, 32], strides = [1, 1]} : vector<8x96xf32> to vector<8x32xf32>
    %27 = arith.mulf %23, %26 : vector<8x32xf32>
    %28 = arith.addf %25, %27 : vector<8x32xf32>
    %29 = math.tanh %28 : vector<8x32xf32>
    %cst_11 = arith.constant 1.000000e+00 : f32
    %30 = vector.broadcast %cst_11 : f32 to vector<8x32xf32>
    %31 = arith.subf %30, %24 : vector<8x32xf32>
    %32 = arith.mulf %31, %29 : vector<8x32xf32>
    %33 = arith.mulf %24, %6 : vector<8x32xf32>
    %34 = arith.addf %32, %33 : vector<8x32xf32>
    %c0_12 = arith.constant 0 : index
    %c0_13 = arith.constant 0 : index
    %35 = vector.load %arg3[%c0_12, %c0_13] : memref<32x96xf32, #tpu.memory_space<vmem>>, vector<32x96xf32>
    %cst_14 = arith.constant dense<0.000000e+00> : vector<8x96xf32>
    %36 = tpu.matmul %34, %35, %cst_14 {dimension_numbers = #tpu.dot_dimension_numbers<[1], [0], [0], [1], [0, 0, 1, 1], [], []>} : vector<8x32xf32>, vector<32x96xf32>, vector<8x96xf32> -> vector<8x96xf32>
    %c0_15 = arith.constant 0 : index
    %c0_16 = arith.constant 0 : index
    %37 = vector.load %arg7[%c0_15, %c0_16] : memref<1x96xf32, #tpu.memory_space<vmem>>, vector<1x96xf32>
    %38 = vector.broadcast %37 : vector<1x96xf32> to vector<8x96xf32>
    %39 = arith.addf %36, %38 : vector<8x96xf32>
    %40 = vector.extract_strided_slice %39 {offsets = [0, 0], sizes = [8, 64], strides = [1, 1]} : vector<8x96xf32> to vector<8x64xf32>
    %41 = vector.extract_strided_slice %14 {offsets = [0, 0], sizes = [8, 64], strides = [1, 1]} : vector<8x96xf32> to vector<8x64xf32>
    %42 = arith.addf %40, %41 : vector<8x64xf32>
    %43 = arith.negf %42 : vector<8x64xf32>
    %44 = math.exp %43 : vector<8x64xf32>
    %cst_17 = arith.constant 1.000000e+00 : f32
    %45 = vector.broadcast %cst_17 : f32 to vector<8x64xf32>
    %46 = arith.addf %45, %44 : vector<8x64xf32>
    %47 = arith.divf %45, %46 : vector<8x64xf32>
    %48 = vector.extract_strided_slice %47 {offsets = [0, 0], sizes = [8, 32], strides = [1, 1]} : vector<8x64xf32> to vector<8x32xf32>
    %49 = vector.extract_strided_slice %47 {offsets = [0, 32], sizes = [8, 32], strides = [1, 1]} : vector<8x64xf32> to vector<8x32xf32>
    %50 = vector.extract_strided_slice %39 {offsets = [0, 64], sizes = [8, 32], strides = [1, 1]} : vector<8x96xf32> to vector<8x32xf32>
    %51 = vector.extract_strided_slice %14 {offsets = [0, 64], sizes = [8, 32], strides = [1, 1]} : vector<8x96xf32> to vector<8x32xf32>
    %52 = arith.mulf %48, %51 : vector<8x32xf32>
    %53 = arith.addf %50, %52 : vector<8x32xf32>
    %54 = math.tanh %53 : vector<8x32xf32>
    %cst_18 = arith.constant 1.000000e+00 : f32
    %55 = vector.broadcast %cst_18 : f32 to vector<8x32xf32>
    %56 = arith.subf %55, %49 : vector<8x32xf32>
    %57 = arith.mulf %56, %54 : vector<8x32xf32>
    %58 = arith.mulf %49, %6 : vector<8x32xf32>
    %59 = arith.addf %57, %58 : vector<8x32xf32>
    %c0_19 = arith.constant 0 : index
    %c0_20 = arith.constant 0 : index
    %60 = vector.load %arg4[%c0_19, %c0_20] : memref<32x16xf32, #tpu.memory_space<vmem>>, vector<32x16xf32>
    %cst_21 = arith.constant dense<0.000000e+00> : vector<8x16xf32>
    %61 = tpu.matmul %59, %60, %cst_21 {dimension_numbers = #tpu.dot_dimension_numbers<[1], [0], [0], [1], [0, 0, 1, 1], [], []>} : vector<8x32xf32>, vector<32x16xf32>, vector<8x16xf32> -> vector<8x16xf32>
    %c0_22 = arith.constant 0 : index
    %c0_23 = arith.constant 0 : index
    %62 = vector.load %arg8[%c0_22, %c0_23] : memref<1x16xf32, #tpu.memory_space<vmem>>, vector<1x16xf32>
    %63 = vector.broadcast %62 : vector<1x16xf32> to vector<8x16xf32>
    %64 = arith.addf %61, %63 : vector<8x16xf32>
    %c0_24 = arith.constant 0 : index
    %c0_25 = arith.constant 0 : index
    %65 = vector.load %arg9[%c0_24, %c0_25] : memref<8x16xf32, #tpu.memory_space<vmem>>, vector<8x16xf32>
    tpu.vector_store %arg9[%c0_24, %c0_25], %64 {strides = array<i32>} : memref<8x16xf32, #tpu.memory_space<vmem>>, vector<8x16xf32>,
    return
  }
}

</mosaic_0001>

<llo_original>
// kernel: tpu_custom_call.1
$region0: #{tpu_custom_call.1}
  #allocation0 [shape = 'u32[]', space=smem, size = 0x4, offset = 0x4, fixed_abs, tag = 'smem constant byte address 0x4 - core index']
  #allocation1 [shape = 'u32[144,128]{1,0:T(1,128)}', space=vmem, size = 0x12000, scoped, tag = 'internal scratch']
  %s0 = inlined_call_operand.vmem [shape: f32[8,16], index: 0, kind: input, shape index: {}]
  %s1 = inlined_call_operand.vmem [shape: f32[16,128], index: 1, kind: input, shape index: {}]
  %s2 = inlined_call_operand.hbm [shape: f32[32,192], index: 2, kind: input, shape index: {}]
  %s3 = inlined_call_operand.vmem [shape: f32[32,96], index: 3, kind: input, shape index: {}]
  %s4 = inlined_call_operand.vmem [shape: f32[32,16], index: 4, kind: input, shape index: {}]
  %s5 = inlined_call_operand.vmem [shape: f32[1,128], index: 5, kind: input, shape index: {}]
  %s6 = inlined_call_operand.vmem [shape: f32[1,192], index: 6, kind: input, shape index: {}]
  %s7 = inlined_call_operand.vmem [shape: f32[1,96], index: 7, kind: input, shape index: {}]
  %s8 = inlined_call_operand.vmem [shape: f32[1,16], index: 8, kind: input, shape index: {}]
  %s9 = inlined_call_operand.hbm [shape: f32[8,16], index: 9, kind: output, shape index: {}]
  %s10 = sld [smem:[#allocation0]]
  $region50: #{tpu_custom_call.1} parent=0
    _
  %s12 = ssub.s32 1, %s10
  %s13 = scalar_select 0, %s12, %s10
  $region1: #{tpu_custom_call.1} parent=0
    #allocation2 [shape = 'u8[32768]{0}', space=vmem, size = 0x8000, scoped, tag = 'input window, operand 2, single buffered']
    #allocation3 [shape = 's32[1]{0}', space=sflag, size = 0x4, scoped, tag = 'scoped memory for tpu_custom_call.1']
    #allocation4 [shape = 's32[1]{0}', space=sflag, size = 0x4, scoped, tag = 'scoped memory for tpu_custom_call.1']
    #allocation5 [shape = 'u8[4096]{0}', space=vmem, size = 0x1000, scoped, tag = 'output window, operand 0, single buffered']
    %14 = vsyncpa [#allocation3], 0
    %15 = vsyncpa [#allocation4], 0
    // Predicated region
    $region2: #{tpu_custom_call.1} parent=1 // pred_check
      _
    $region3: #{tpu_custom_call.1} parent=1 // pred_check_branch
      %17 = sbr.rel (0) target = $region5
    $region4: #{tpu_custom_call.1} parent=1 // pred_region
      _
    $region5: #{tpu_custom_call.1} parent=1 // pred_fallthru
      _
    // Predicated region
    $region6: #{tpu_custom_call.1} parent=1 // pred_check
      _
    $region7: #{tpu_custom_call.1} parent=1 // pred_check_branch
      %19 = sbr.rel (0) target = $region9
    $region8: #{tpu_custom_call.1} parent=1 // pred_region
      _
    $region9: #{tpu_custom_call.1} parent=1 // pred_fallthru
      _
    // Predicated region
    $region10: #{tpu_custom_call.1} parent=1 // pred_check
      _
    $region11: #{tpu_custom_call.1} parent=1 // pred_check_branch
      %21 = sbr.rel (0) target = $region13
    $region12: #{tpu_custom_call.1} parent=1 // pred_region
      %s23 = ssub.s32 1024, 1024
      %24 = vsyncadd [#allocation3], %s23
      %s25 = sshll.u32 [#allocation2], 4
      %s26 = int_to_ptr.vmem [resolvable:$true] %s25
      %31 = dma.hbm_to_vmem [thread:$0]  %s2, 1024, %s26, [#allocation3], 256, 256, 16
    $region13: #{tpu_custom_call.1} parent=1 // pred_fallthru
      _
    // Predicated region
    $region14: #{tpu_custom_call.1} parent=1 // pred_check
      _
    $region15: #{tpu_custom_call.1} parent=1 // pred_check_branch
      %33 = sbr.rel (0) target = $region17
    $region16: #{tpu_custom_call.1} parent=1 // pred_region
      _
    $region17: #{tpu_custom_call.1} parent=1 // pred_fallthru
      _
    // Predicated region
    $region18: #{tpu_custom_call.1} parent=1 // pred_check
      _
    $region19: #{tpu_custom_call.1} parent=1 // pred_check_branch
      %35 = sbr.rel (0) target = $region21
    $region20: #{tpu_custom_call.1} parent=1 // pred_region
      _
    $region21: #{tpu_custom_call.1} parent=1 // pred_fallthru
      _
    // Predicated region
    $region22: #{tpu_custom_call.1} parent=1 // pred_check
      _
    $region23: #{tpu_custom_call.1} parent=1 // pred_check_branch
      %37 = sbr.rel (0) target = $region25
    $region24: #{tpu_custom_call.1} parent=1 // pred_region
      _
    $region25: #{tpu_custom_call.1} parent=1 // pred_fallthru
      _
    // Predicated region
    $region26: #{tpu_custom_call.1} parent=1 // pred_check
      _
    $region27: #{tpu_custom_call.1} parent=1 // pred_check_branch
      %39 = sbr.rel (0) target = $region29
    $region28: #{tpu_custom_call.1} parent=1 // pred_region
      _
    $region29: #{tpu_custom_call.1} parent=1 // pred_fallthru
      _
    // Predicated region
    $region30: #{tpu_custom_call.1} parent=1 // pred_check
      _
    $region31: #{tpu_custom_call.1} parent=1 // pred_check_branch
      %41 = sbr.rel (0) target = $region33
    $region32: #{tpu_custom_call.1} parent=1 // pred_region
      _
    $region33: #{tpu_custom_call.1} parent=1 // pred_fallthru
      _
    // Predicated region
    $region34: #{tpu_custom_call.1} parent=1 // pred_check
      _
    $region35: #{tpu_custom_call.1} parent=1 // pred_check_branch
      %43 = sbr.rel (0) target = $region37
    $region36: #{tpu_custom_call.1} parent=1 // pred_region
      _
    $region37: #{tpu_custom_call.1} parent=1 // pred_fallthru
      _
    // Predicated region
    $region38: #{tpu_custom_call.1} parent=1 // pred_check
      _
    $region39: #{tpu_custom_call.1} parent=1 // pred_check_branch
      %45 = sbr.rel (0) target = $region41
    $region40: #{tpu_custom_call.1} parent=1 // pred_region
      %46 = dma.done [#allocation3], 1024
    $region41: #{tpu_custom_call.1} parent=1 // pred_fallthru
      _
    %v47 = vld [vmem:[%s0] sm:$0xff]
    %v48 = vld [vmem:[%s1] sm:$0xff]
    %v49 = vld [vmem:[%s1 + $0x8] sm:$0xff]
    %v50 = vld [vmem:[%s5] sm:$0x1]
    %v52 = vlaneseq
    %v53 = vshrl.u32 %v52, 7
    %v54 = vsub.s32 0, %v53
    %v55 = vrot.slane %v50, %v54
    %vm57 = vcmask 130048
    %v59 = vsel %vm57, %v47, 0
    %61 = vmatprep.subr.mxu0 0.0
    %62 = vmatpush1.msra.mxu0 %v48
    %63 = vmatprep.subr.mxu0 0.0
    %64 = vmatpush1.msra.mxu0 %v49
    %65 = vmatprep.subr.mxu0 0.0
    %66 = vmatpush1.msra.mxu0 0.0
    %67 = vmatprep.subr.mxu0 0.0
    %68 = vmatpush1.msra.mxu0 0.0
    %69 = vmatprep.subr.mxu0 0.0
    %70 = vmatpush1.msra.mxu0 0.0
    %71 = vmatprep.subr.mxu0 0.0
    %72 = vmatpush1.msra.mxu0 0.0
    %73 = vmatprep.subr.mxu0 0.0
    %74 = vmatpush1.msra.mxu0 0.0
    %75 = vmatprep.subr.mxu0 0.0
    %76 = vmatpush1.msra.mxu0 0.0
    %77 = vmatprep.subr.mxu0 0.0
    %78 = vmatpush1.msra.mxu0 0.0
    %79 = vmatprep.subr.mxu0 0.0
    %80 = vmatpush1.msra.mxu0 0.0
    %81 = vmatprep.subr.mxu0 0.0
    %82 = vmatpush1.msra.mxu0 0.0
    %83 = vmatprep.subr.mxu0 0.0
    %84 = vmatpush1.msra.mxu0 0.0
    %85 = vmatprep.subr.mxu0 0.0
    %86 = vmatpush1.msra.mxu0 0.0
    %87 = vmatprep.subr.mxu0 0.0
    %88 = vmatpush1.msra.mxu0 0.0
    %89 = vmatprep.subr.mxu0 0.0
    %90 = vmatpush1.msra.mxu0 0.0
    %91 = vmatprep.subr.mxu0 0.0
    %92 = vmatpush1.msra.mxu0 0.0
    %93 = vmatprep.subr.mxu0 0.0
    %94 = vmatpush1.msra.mxu0 0.0
    %95 = vmatprep.subr.mxu0 0.0
    %96 = vmatpush1.msra.mxu0 0.0
    %97 = vmatprep.subr.mxu0 0.0
    %98 = vmatpush1.msra.mxu0 0.0
    %99 = vmatprep.subr.mxu0 0.0
    %100 = vmatpush1.msra.mxu0 0.0
    %101 = vmatprep.subr.mxu0 0.0
    %102 = vmatpush1.msra.mxu0 0.0
    %103 = vmatprep.subr.mxu0 0.0
    %104 = vmatpush1.msra.mxu0 0.0
    %105 = vmatprep.subr.mxu0 0.0
    %106 = vmatpush1.msra.mxu0 0.0
    %107 = vmatprep.subr.mxu0 0.0
    %108 = vmatpush1.msra.mxu0 0.0
    %109 = vmatprep.subr.mxu0 0.0
    %110 = vmatpush1.msra.mxu0 0.0
    %111 = vmatprep.subr.mxu0 0.0
    %112 = vmatpush1.msra.mxu0 0.0
    %113 = vmatprep.subr.mxu0 0.0
    %114 = vmatpush1.msra.mxu0 0.0
    %115 = vmatprep.subr.mxu0 0.0
    %116 = vmatpush1.msra.mxu0 0.0
    %117 = vmatprep.subr.mxu0 0.0
    %118 = vmatpush1.msra.mxu0 0.0
    %119 = vmatprep.subr.mxu0 0.0
    %120 = vmatpush1.msra.mxu0 0.0
    %121 = vmatprep.subr.mxu0 0.0
    %122 = vmatpush1.msra.mxu0 0.0
    %123 = vmatprep.subr.mxu0 0.0
    %124 = vmatpush1.msra.mxu0 0.0
    %125 = vmatprep.mubr.f32.mxu0 0.0
    %126 = vmatmul.mubr.f32.gmra.mrb[0].mxu0 %v59
    %v127 = vpop.f32.mrb[0].mxu0
    %v128 = vadd.f32 %v55, %v127
    %v129 = vpop.f32.mrb[0].mxu0
    %130 = vdwg.mxu0
    %v131 = vld [vmem:[#allocation2] sm:$0xff]
    %v132 = vld [vmem:[#allocation2 + $0x8] sm:$0xff]
    %v133 = vld [vmem:[#allocation2 + $0x10] sm:$0xff]
    %v134 = vld [vmem:[#allocation2 + $0x18] sm:$0xff]
    %v135 = vld [vmem:[#allocation2 + $0x20] sm:$0xff]
    %v136 = vld [vmem:[#allocation2 + $0x28] sm:$0xff]
    %v137 = vld [vmem:[#allocation2 + $0x30] sm:$0xff]
    %v138 = vld [vmem:[#allocation2 + $0x38] sm:$0xff]
    %v139 = vld [vmem:[%s6] sm:$0x3]
    %v141 = vlaneseq
    %v142 = vshrl.u32 %v141, 7
    %v143 = vsub.s32 0, %v142
    %v144 = vrot.slane %v139, %v143
    %v145 = vlaneseq
    %v146 = vshrl.u32 %v145, 7
    %v147 = vsub.s32 1, %v146
    %v148 = vrot.slane %v139, %v147
    %vm151 = vcmask 261120
    %v153 = vsel %vm151, %v128, 0
    %155 = vmatprep.subr.mxu0 %v132
    %156 = vmatpush1.msra.mxu0 %v131
    %157 = vmatprep.subr.mxu0 %v134
    %158 = vmatpush1.msra.mxu0 %v133
    %159 = vmatprep.subr.mxu0 %v136
    %160 = vmatpush1.msra.mxu0 %v135
    %161 = vmatprep.subr.mxu0 %v138
    %162 = vmatpush1.msra.mxu0 %v137
    %163 = vmatprep.subr.mxu0 0.0
    %164 = vmatpush1.msra.mxu0 0.0
    %165 = vmatprep.subr.mxu0 0.0
    %166 = vmatpush1.msra.mxu0 0.0
    %167 = vmatprep.subr.mxu0 0.0
    %168 = vmatpush1.msra.mxu0 0.0
    %169 = vmatprep.subr.mxu0 0.0
    %170 = vmatpush1.msra.mxu0 0.0
    %171 = vmatprep.subr.mxu0 0.0
    %172 = vmatpush1.msra.mxu0 0.0
    %173 = vmatprep.subr.mxu0 0.0
    %174 = vmatpush1.msra.mxu0 0.0
    %175 = vmatprep.subr.mxu0 0.0
    %176 = vmatpush1.msra.mxu0 0.0
    %177 = vmatprep.subr.mxu0 0.0
    %178 = vmatpush1.msra.mxu0 0.0
    %179 = vmatprep.subr.mxu0 0.0
    %180 = vmatpush1.msra.mxu0 0.0
    %181 = vmatprep.subr.mxu0 0.0
    %182 = vmatpush1.msra.mxu0 0.0
    %183 = vmatprep.subr.mxu0 0.0
    %184 = vmatpush1.msra.mxu0 0.0
    %185 = vmatprep.subr.mxu0 0.0
    %186 = vmatpush1.msra.mxu0 0.0
    %187 = vmatprep.subr.mxu0 0.0
    %188 = vmatpush1.msra.mxu0 0.0
    %189 = vmatprep.subr.mxu0 0.0
    %190 = vmatpush1.msra.mxu0 0.0
    %191 = vmatprep.subr.mxu0 0.0
    %192 = vmatpush1.msra.mxu0 0.0
    %193 = vmatprep.subr.mxu0 0.0
    %194 = vmatpush1.msra.mxu0 0.0
    %195 = vmatprep.subr.mxu0 0.0
    %196 = vmatpush1.msra.mxu0 0.0
    %197 = vmatprep.subr.mxu0 0.0
    %198 = vmatpush1.msra.mxu0 0.0
    %199 = vmatprep.subr.mxu0 0.0
    %200 = vmatpush1.msra.mxu0 0.0
    %201 = vmatprep.subr.mxu0 0.0
    %202 = vmatpush1.msra.mxu0 0.0
    %203 = vmatprep.subr.mxu0 0.0
    %204 = vmatpush1.msra.mxu0 0.0
    %205 = vmatprep.subr.mxu0 0.0
    %206 = vmatpush1.msra.mxu0 0.0
    %207 = vmatprep.subr.mxu0 0.0
    %208 = vmatpush1.msra.mxu0 0.0
    %209 = vmatprep.subr.mxu0 0.0
    %210 = vmatpush1.msra.mxu0 0.0
    %211 = vmatprep.subr.mxu0 0.0
    %212 = vmatpush1.msra.mxu0 0.0
    %213 = vmatprep.subr.mxu0 0.0
    %214 = vmatpush1.msra.mxu0 0.0
    %215 = vmatprep.subr.mxu0 0.0
    %216 = vmatpush1.msra.mxu0 0.0
    %217 = vmatprep.subr.mxu0 0.0
    %218 = vmatpush1.msra.mxu0 0.0
    %219 = vmatprep.mubr.f32.mxu0 0.0
    %220 = vmatmul.mubr.f32.gmra.mrb[0].mxu0 %v153
    %v221 = vpop.f32.mrb[0].mxu0
    %v222 = vadd.f32 %v144, %v221
    %v223 = vpop.f32.mrb[0].mxu0
    %v224 = vadd.f32 %v148, %v223
    %225 = vdwg.mxu0
    %227 = vrot.lane.b32.xlu0 %v222, 32
    %v228 = vpop.permute.xlu0 %227
    %v230 = vadd.f32 %v128, %v228
    %v231 = vxor.u32 %v230, 2147483648
    %v232 = vmul.f32 %v231, 1.442695
    %v233 = vpow.pop %v232
    %v234 = vadd.f32 %v233, 1.0
    %v235 = vrcp.pop %v234
    %v236 = vmul.f32 1.0, %v235
    %237 = vrot.lane.b32.xlu0 %v222, 96
    %v238 = vpop.permute.xlu0 %237
    %v240 = vmul.f32 %v236, %v238
    %242 = vrot.lane.b32.xlu0 %v240, 64
    %v243 = vpop.permute.xlu0 %242
    %v245 = vadd.f32 %v128, %v243
    %v246 = vtanh.pop %v245
    %v247 = vsub.f32 1.0, %v236
    %249 = vrot.lane.b32.xlu0 %v246, 96
    %v250 = vpop.permute.xlu0 %249
    %v252 = vmul.f32 %v247, %v250
    %253 = vrot.lane.b32.xlu0 %v128, 64
    %v254 = vpop.permute.xlu0 %253
    %v256 = vmul.f32 %v236, %v254
    %v257 = vadd.f32 %v252, %v256
    %v258 = vld [vmem:[%s3] sm:$0xff]
    %v259 = vld [vmem:[%s3 + $0x8] sm:$0xff]
    %v260 = vld [vmem:[%s3 + $0x10] sm:$0xff]
    %v261 = vld [vmem:[%s3 + $0x18] sm:$0xff]
    %v262 = vld [vmem:[%s7] sm:$0x1]
    %v264 = vlaneseq
    %v265 = vshrl.u32 %v264, 7
    %v266 = vsub.s32 0, %v265
    %v267 = vrot.slane %v262, %v266
    %270 = vrot.lane.b32.xlu0 %v257, 64
    %v271 = vpop.permute.xlu0 %270
    %v272 = vsel %vm151, %v271, 0
    %274 = vmatprep.subr.mxu0 0.0
    %275 = vmatpush1.msra.mxu0 %v258
    %276 = vmatprep.subr.mxu0 0.0
    %277 = vmatpush1.msra.mxu0 %v259
    %278 = vmatprep.subr.mxu0 0.0
    %279 = vmatpush1.msra.mxu0 %v260
    %280 = vmatprep.subr.mxu0 0.0
    %281 = vmatpush1.msra.mxu0 %v261
    %282 = vmatprep.subr.mxu0 0.0
    %283 = vmatpush1.msra.mxu0 0.0
    %284 = vmatprep.subr.mxu0 0.0
    %285 = vmatpush1.msra.mxu0 0.0
    %286 = vmatprep.subr.mxu0 0.0
    %287 = vmatpush1.msra.mxu0 0.0
    %288 = vmatprep.subr.mxu0 0.0
    %289 = vmatpush1.msra.mxu0 0.0
    %290 = vmatprep.subr.mxu0 0.0
    %291 = vmatpush1.msra.mxu0 0.0
    %292 = vmatprep.subr.mxu0 0.0
    %293 = vmatpush1.msra.mxu0 0.0
    %294 = vmatprep.subr.mxu0 0.0
    %295 = vmatpush1.msra.mxu0 0.0
    %296 = vmatprep.subr.mxu0 0.0
    %297 = vmatpush1.msra.mxu0 0.0
    %298 = vmatprep.subr.mxu0 0.0
    %299 = vmatpush1.msra.mxu0 0.0
    %300 = vmatprep.subr.mxu0 0.0
    %301 = vmatpush1.msra.mxu0 0.0
    %302 = vmatprep.subr.mxu0 0.0
    %303 = vmatpush1.msra.mxu0 0.0
    %304 = vmatprep.subr.mxu0 0.0
    %305 = vmatpush1.msra.mxu0 0.0
    %306 = vmatprep.subr.mxu0 0.0
    %307 = vmatpush1.msra.mxu0 0.0
    %308 = vmatprep.subr.mxu0 0.0
    %309 = vmatpush1.msra.mxu0 0.0
    %310 = vmatprep.subr.mxu0 0.0
    %311 = vmatpush1.msra.mxu0 0.0
    %312 = vmatprep.subr.mxu0 0.0
    %313 = vmatpush1.msra.mxu0 0.0
    %314 = vmatprep.subr.mxu0 0.0
    %315 = vmatpush1.msra.mxu0 0.0
    %316 = vmatprep.subr.mxu0 0.0
    %317 = vmatpush1.msra.mxu0 0.0
    %318 = vmatprep.subr.mxu0 0.0
    %319 = vmatpush1.msra.mxu0 0.0
    %320 = vmatprep.subr.mxu0 0.0
    %321 = vmatpush1.msra.mxu0 0.0
    %322 = vmatprep.subr.mxu0 0.0
    %323 = vmatpush1.msra.mxu0 0.0
    %324 = vmatprep.subr.mxu0 0.0
    %325 = vmatpush1.msra.mxu0 0.0
    %326 = vmatprep.subr.mxu0 0.0
    %327 = vmatpush1.msra.mxu0 0.0
    %328 = vmatprep.subr.mxu0 0.0
    %329 = vmatpush1.msra.mxu0 0.0
    %330 = vmatprep.subr.mxu0 0.0
    %331 = vmatpush1.msra.mxu0 0.0
    %332 = vmatprep.subr.mxu0 0.0
    %333 = vmatpush1.msra.mxu0 0.0
    %334 = vmatprep.subr.mxu0 0.0
    %335 = vmatpush1.msra.mxu0 0.0
    %336 = vmatprep.subr.mxu0 0.0
    %337 = vmatpush1.msra.mxu0 0.0
    %338 = vmatprep.mubr.f32.mxu0 0.0
    %339 = vmatmul.mubr.f32.gmra.mrb[0].mxu0 %v272
    %v340 = vpop.f32.mrb[0].mxu0
    %v341 = vadd.f32 %v267, %v340
    %v342 = vpop.f32.mrb[0].mxu0
    %343 = vdwg.mxu0
    %345 = vrot.lane.b32.xlu0 %v224, 32
    %v346 = vpop.permute.xlu0 %345
    %v347 = vsel %vm151, %v228, %v346
    %v349 = vadd.f32 %v341, %v347
    %v350 = vxor.u32 %v349, 2147483648
    %v351 = vmul.f32 %v350, 1.442695
    %v352 = vpow.pop %v351
    %v353 = vadd.f32 %v352, 1.0
    %v354 = vrcp.pop %v353
    %v355 = vmul.f32 1.0, %v354
    %356 = vrot.lane.b32.xlu0 %v224, 96
    %v357 = vpop.permute.xlu0 %356
    %v359 = vmul.f32 %v355, %v357
    %361 = vrot.lane.b32.xlu0 %v359, 64
    %v362 = vpop.permute.xlu0 %361
    %v364 = vadd.f32 %v341, %v362
    %v365 = vtanh.pop %v364
    %v366 = vsub.f32 1.0, %v355
    %368 = vrot.lane.b32.xlu0 %v365, 96
    %v369 = vpop.permute.xlu0 %368
    %v371 = vmul.f32 %v366, %v369
    %372 = vrot.lane.b32.xlu0 %v128, 32
    %v373 = vpop.permute.xlu0 %372
    %v375 = vmul.f32 %v355, %v373
    %v376 = vadd.f32 %v371, %v375
    %v377 = vld [vmem:[%s4] sm:$0xff]
    %v378 = vld [vmem:[%s4 + $0x8] sm:$0xff]
    %v379 = vld [vmem:[%s4 + $0x10] sm:$0xff]
    %v380 = vld [vmem:[%s4 + $0x18] sm:$0xff]
    %v381 = vld [vmem:[%s8] sm:$0x1]
    %v383 = vlaneseq
    %v384 = vshrl.u32 %v383, 7
    %v385 = vsub.s32 0, %v384
    %v386 = vrot.slane %v381, %v385
    %389 = vrot.lane.b32.xlu0 %v376, 96
    %v390 = vpop.permute.xlu0 %389
    %v391 = vsel %vm151, %v390, 0
    %393 = vmatprep.subr.mxu0 0.0
    %394 = vmatpush1.msra.mxu0 %v377
    %395 = vmatprep.subr.mxu0 0.0
    %396 = vmatpush1.msra.mxu0 %v378
    %397 = vmatprep.subr.mxu0 0.0
    %398 = vmatpush1.msra.mxu0 %v379
    %399 = vmatprep.subr.mxu0 0.0
    %400 = vmatpush1.msra.mxu0 %v380
    %401 = vmatprep.subr.mxu0 0.0
    %402 = vmatpush1.msra.mxu0 0.0
    %403 = vmatprep.subr.mxu0 0.0
    %404 = vmatpush1.msra.mxu0 0.0
    %405 = vmatprep.subr.mxu0 0.0
    %406 = vmatpush1.msra.mxu0 0.0
    %407 = vmatprep.subr.mxu0 0.0
    %408 = vmatpush1.msra.mxu0 0.0
    %409 = vmatprep.subr.mxu0 0.0
    %410 = vmatpush1.msra.mxu0 0.0
    %411 = vmatprep.subr.mxu0 0.0
    %412 = vmatpush1.msra.mxu0 0.0
    %413 = vmatprep.subr.mxu0 0.0
    %414 = vmatpush1.msra.mxu0 0.0
    %415 = vmatprep.subr.mxu0 0.0
    %416 = vmatpush1.msra.mxu0 0.0
    %417 = vmatprep.subr.mxu0 0.0
    %418 = vmatpush1.msra.mxu0 0.0
    %419 = vmatprep.subr.mxu0 0.0
    %420 = vmatpush1.msra.mxu0 0.0
    %421 = vmatprep.subr.mxu0 0.0
    %422 = vmatpush1.msra.mxu0 0.0
    %423 = vmatprep.subr.mxu0 0.0
    %424 = vmatpush1.msra.mxu0 0.0
    %425 = vmatprep.subr.mxu0 0.0
    %426 = vmatpush1.msra.mxu0 0.0
    %427 = vmatprep.subr.mxu0 0.0
    %428 = vmatpush1.msra.mxu0 0.0
    %429 = vmatprep.subr.mxu0 0.0
    %430 = vmatpush1.msra.mxu0 0.0
    %431 = vmatprep.subr.mxu0 0.0
    %432 = vmatpush1.msra.mxu0 0.0
    %433 = vmatprep.subr.mxu0 0.0
    %434 = vmatpush1.msra.mxu0 0.0
    %435 = vmatprep.subr.mxu0 0.0
    %436 = vmatpush1.msra.mxu0 0.0
    %437 = vmatprep.subr.mxu0 0.0
    %438 = vmatpush1.msra.mxu0 0.0
    %439 = vmatprep.subr.mxu0 0.0
    %440 = vmatpush1.msra.mxu0 0.0
    %441 = vmatprep.subr.mxu0 0.0
    %442 = vmatpush1.msra.mxu0 0.0
    %443 = vmatprep.subr.mxu0 0.0
    %444 = vmatpush1.msra.mxu0 0.0
    %445 = vmatprep.subr.mxu0 0.0
    %446 = vmatpush1.msra.mxu0 0.0
    %447 = vmatprep.subr.mxu0 0.0
    %448 = vmatpush1.msra.mxu0 0.0
    %449 = vmatprep.subr.mxu0 0.0
    %450 = vmatpush1.msra.mxu0 0.0
    %451 = vmatprep.subr.mxu0 0.0
    %452 = vmatpush1.msra.mxu0 0.0
    %453 = vmatprep.subr.mxu0 0.0
    %454 = vmatpush1.msra.mxu0 0.0
    %455 = vmatprep.subr.mxu0 0.0
    %456 = vmatpush1.msra.mxu0 0.0
    %457 = vmatprep.mubr.f32.mxu0 0.0
    %458 = vmatmul.mubr.f32.gmra.mrb[0].mxu0 %v391
    %v459 = vpop.f32.mrb[0].mxu0
    %v460 = vadd.f32 %v386, %v459
    %v461 = vpop.f32.mrb[0].mxu0
    %462 = vdwg.mxu0
    %463 = vst.msk [vmem:[#allocation5] sm:$0xff] %vm57, %v460
    // Predicated region
    $region42: #{tpu_custom_call.1} parent=1 // pred_check
      _
    $region43: #{tpu_custom_call.1} parent=1 // pred_check_branch
      %465 = sbr.rel (0) target = $region45
    $region44: #{tpu_custom_call.1} parent=1 // pred_region
      %s467 = ssub.s32 128, 128
      %468 = vsyncadd [#allocation4], %s467
      %s470 = sshll.u32 [#allocation5], 4
      %s471 = int_to_ptr.vmem [resolvable:$true] %s470
      %473 = dma.vmem_to_hbm [thread:$0]  %s471, 128, %s9, [#allocation4]
    $region45: #{tpu_custom_call.1} parent=1 // pred_fallthru
      _
    // Predicated region
    $region46: #{tpu_custom_call.1} parent=1 // pred_check
      _
    $region47: #{tpu_custom_call.1} parent=1 // pred_check_branch
      %475 = sbr.rel (0) target = $region49
    $region48: #{tpu_custom_call.1} parent=1 // pred_region
      %476 = dma.done [#allocation4], 128
    $region49: #{tpu_custom_call.1} parent=1 // pred_fallthru
      _
    %477 = vsyncpa [#allocation3], 1
    %478 = vsyncpa [#allocation4], 1

</llo_original>
